<compile_context>
chip_gen: v5e
topology: v5e:2x2
jax: 0.10.0
libtpu: 0.0.40
codegen_flags: <defaults>
</compile_context>

<pallas_src>
import functools

import jax
import jax.numpy as jnp
from jax.experimental import pallas as pl
from jax.experimental.pallas import tpu as pltpu


def _round_up(x, m):
    return (x + m - 1) // m * m


def _critic_kernel(x_ref, w1_ref, b1_ref, w2_ref, b2_ref, o_ref):
    # x: [tb, D]   w1: [D, H]   b1: [1, H]   w2: [H, 1]   b2 (SMEM): [1]   o: [tb, 1]
    # Layer 1 on the MXU with f32 accumulation: [tb, D] @ [D, H] -> [tb, H].
    h = jnp.dot(x_ref[...], w1_ref[...], preferred_element_type=jnp.float32)
    h = jnp.maximum(h + b1_ref[...], 0.0)              # bias + ReLU in f32 (VPU)
    # Layer 2 kept entirely in f32 (negligible FLOPs; avoids a bf16 downcast).
    y = jnp.dot(h, w2_ref[...], preferred_element_type=jnp.float32) + b2_ref[0]
    o_ref[...] = y.astype(o_ref.dtype)


@functools.partial(jax.jit, static_argnames=("tb_max",))
def critic_forward(x, w1, b1, w2, b2, *, tb_max=8192):
    """Critic MLP as a single Pallas TPU kernel.

    x:  [B, input_dim]  (f32, or bf16 if the caller natively holds bf16 activations)
    w1: [input_dim, hidden], b1: [hidden]
    w2: [hidden, 1],         b2: [1]
    tb_max: upper bound on the batch tile (rows per grid step).
    returns: [B, 1] float32
    """
    B, d_in = x.shape
    H = w1.shape[1]

    if B == 0:  # degenerate batch guard
        return jnp.zeros((0, 1), jnp.float32)

    x_item = x.dtype.itemsize
    # First-layer weights follow x's native dtype (casting the tiny weight matrix
    # is free; x itself is never rewritten in HBM).
    w1c = w1.astype(x.dtype)
    b1c = b1.reshape(1, H).astype(jnp.float32)
    w2c = w2.reshape(H, 1).astype(jnp.float32)   # second GEMM stays f32
    b2c = b2.reshape(1).astype(jnp.float32)      # scalar -> SMEM

    # --- batch tile sizing ----------------------------------------------------
    # Per-row VMEM cost of the streamed (double-buffered) x and out blocks; VMEM
    # lane-pads the minor dim to 128.
    row_vmem = 2 * (_round_up(d_in, 128) * x_item + 128 * 4)
    vmem_budget = 24 << 20                               # conservative for v7x (64 MiB phys)
    tb_cap = max(8, (vmem_budget // row_vmem) // 8 * 8)
    tb = max(8, min(tb_cap,
                    _round_up(max(tb_max, 8), 8),
                    _round_up(pl.cdiv(B, 2), 8)))        # >=2 tiles when B allows (v7x)
    n_tiles = pl.cdiv(B, tb)                             # ragged last tile is masked

    weights_vmem = 2 * (_round_up(d_in, 8) * _round_up(H, 128) * x_item
                        + (_round_up(H, 8) + 16) * 128 * 4)
    vmem_limit = int(min(max(tb * row_vmem + weights_vmem + (2 << 20), 8 << 20),
                         32 << 20))

    cost = pl.CostEstimate(
        flops=2 * B * d_in * H + 2 * B * H,
        transcendentals=0,
        bytes_accessed=B * d_in * x_item + B * 4
                       + d_in * H * x_item + (2 * H + 1) * 4,
    )

    out = pl.pallas_call(
        _critic_kernel,
        out_shape=jax.ShapeDtypeStruct((B, 1), jnp.float32),
        grid=(n_tiles,),
        in_specs=[
            pl.BlockSpec((tb, d_in), lambda i: (i, 0)),            # streamed x tile
            pl.BlockSpec((d_in, H), lambda i: (0, 0)),             # resident w1
            pl.BlockSpec((1, H),    lambda i: (0, 0)),             # resident b1
            pl.BlockSpec((H, 1),    lambda i: (0, 0)),             # resident w2 (f32)
            pl.BlockSpec(memory_space=pltpu.MemorySpace.SMEM),     # b2 scalar in SMEM
        ],
        out_specs=pl.BlockSpec((tb, 1), lambda i: (i, 0)),
        compiler_params=pltpu.CompilerParams(
            dimension_semantics=("parallel",),   # shards batch tiles over v7x's 2 TCs
            vmem_limit_bytes=vmem_limit),
        cost_estimate=cost,
    )(x, w1c, b1c, w2c, b2c)

    return out


def init_critic_params(key, input_dim=5, hidden=32):
    """Deterministic parameter init mirroring nn.Linear default bounds."""
    k1, k2, k3, k4 = jax.random.split(key, 4)
    bound1 = 1.0 / (input_dim ** 0.5)
    bound2 = 1.0 / (hidden ** 0.5)
    w1 = jax.random.uniform(k1, (input_dim, hidden), jnp.float32, -bound1, bound1)
    b1 = jax.random.uniform(k2, (hidden,),           jnp.float32, -bound1, bound1)
    w2 = jax.random.uniform(k3, (hidden, 1),         jnp.float32, -bound2, bound2)
    b2 = jax.random.uniform(k4, (1,),                jnp.float32, -bound2, bound2)
    return w1, b1, w2, b2


if __name__ == "__main__":
    key = jax.random.PRNGKey(0)
    k_x, k_p, k_x2 = jax.random.split(key, 3)

    input_dim, hidden, batch = 5, 32, 8
    x = jax.random.normal(k_x, (batch, input_dim), dtype=jnp.float32)
    w1, b1, w2, b2 = init_critic_params(k_p, input_dim, hidden)

    ref = jnp.maximum(x @ w1 + b1, 0.0) @ w2 + b2

    # f32 path: matches the PyTorch module numerics.
    y = critic_forward(x, w1, b1, w2, b2)
    jax.block_until_ready(y)
    assert y.shape == (batch, 1)
    assert jnp.allclose(y, ref, atol=1e-4, rtol=1e-4)

    # Multi-tile batch with a ragged last tile: exercises the "parallel" batch grid
    # axis, streamed x tiles, and masked boundary writes.
    x_big = jax.random.normal(k_x2, (300, input_dim), dtype=jnp.float32)
    ref_big = jnp.maximum(x_big @ w1 + b1, 0.0) @ w2 + b2
    y_big = critic_forward(x_big, w1, b1, w2, b2, tb_max=128)
    jax.block_until_ready(y_big)
    assert y_big.shape == (300, 1)
    assert jnp.allclose(y_big, ref_big, atol=1e-4, rtol=1e-4)

    # Natively-bf16 activations (the only case where bf16 helps a memory-bound
    # kernel): layer-1 GEMM in bf16 with f32 accumulation, everything after f32.
    y_bf16 = critic_forward(x.astype(jnp.bfloat16), w1, b1, w2, b2)
    jax.block_until_ready(y_bf16)
    assert y_bf16.shape == (batch, 1)
    assert jnp.allclose(y_bf16, ref, atol=5e-2, rtol=5e-2)

    print("KERNEL_OK")
</pallas_src>

<mosaic_0001>
module attributes {stable_mosaic.version = 11 : i64} {
  func.func @_critic_kernel(%arg0: i32, %arg1: memref<8x5xf32, #tpu.memory_space<vmem>>, %arg2: memref<5x32xf32, #tpu.memory_space<vmem>>, %arg3: memref<1x32xf32, #tpu.memory_space<vmem>>, %arg4: memref<32x1xf32, #tpu.memory_space<vmem>>, %arg5: memref<1xf32, #tpu.memory_space<smem>>, %arg6: memref<8x1xf32, #tpu.memory_space<vmem>>) attributes {dimension_semantics = [#tpu.dimension_semantics<parallel>], iteration_bounds = array<i64: 1>, scalar_prefetch = 0 : i64, scratch_operands = 0 : i64, tpu.core_type = #tpu.core_type<tc>, window_params = [{transform_indices = @transform_0, window_bounds = array<i64: 8, 5>}, {pipeline_mode = #tpu.pipeline_mode<synchronous>, transform_indices = @transform_1, window_bounds = array<i64: 5, 32>}, {pipeline_mode = #tpu.pipeline_mode<synchronous>, transform_indices = @transform_2, window_bounds = array<i64: 1, 32>}, {pipeline_mode = #tpu.pipeline_mode<synchronous>, transform_indices = @transform_3, window_bounds = array<i64: 32, 1>}, {transform_indices = @transform_4, window_bounds = array<i64: 1>}, {transform_indices = @transform_5, window_bounds = array<i64: 8, 1>}]} {
    %c0 = arith.constant 0 : index
    %c0_0 = arith.constant 0 : index
    %0 = vector.load %arg1[%c0, %c0_0] : memref<8x5xf32, #tpu.memory_space<vmem>>, vector<8x5xf32>
    %c0_1 = arith.constant 0 : index
    %c0_2 = arith.constant 0 : index
    %1 = vector.load %arg2[%c0_1, %c0_2] : memref<5x32xf32, #tpu.memory_space<vmem>>, vector<5x32xf32>
    %cst = arith.constant dense<0.000000e+00> : vector<8x32xf32>
    %2 = tpu.matmul %0, %1, %cst {dimension_numbers = #tpu.dot_dimension_numbers<[1], [0], [0], [1], [0, 0, 1, 1], [], []>} : vector<8x5xf32>, vector<5x32xf32>, vector<8x32xf32> -> vector<8x32xf32>
    %c0_3 = arith.constant 0 : index
    %c0_4 = arith.constant 0 : index
    %3 = vector.load %arg3[%c0_3, %c0_4] : memref<1x32xf32, #tpu.memory_space<vmem>>, vector<1x32xf32>
    %4 = vector.broadcast %3 : vector<1x32xf32> to vector<8x32xf32>
    %5 = arith.addf %2, %4 : vector<8x32xf32>
    %cst_5 = arith.constant 0.000000e+00 : f32
    %6 = vector.broadcast %cst_5 : f32 to vector<8x32xf32>
    %7 = arith.maximumf %5, %6 : vector<8x32xf32>
    %c0_6 = arith.constant 0 : index
    %c0_7 = arith.constant 0 : index
    %8 = vector.load %arg4[%c0_6, %c0_7] : memref<32x1xf32, #tpu.memory_space<vmem>>, vector<32x1xf32>
    %cst_8 = arith.constant dense<0.000000e+00> : vector<8x1xf32>
    %9 = tpu.matmul %7, %8, %cst_8 {dimension_numbers = #tpu.dot_dimension_numbers<[1], [0], [0], [1], [0, 0, 1, 1], [], []>} : vector<8x32xf32>, vector<32x1xf32>, vector<8x1xf32> -> vector<8x1xf32>
    %c0_9 = arith.constant 0 : index
    %10 = memref.load %arg5[%c0_9] : memref<1xf32, #tpu.memory_space<smem>>
    %11 = vector.broadcast %10 : f32 to vector<8x1xf32>
    %12 = arith.addf %9, %11 : vector<8x1xf32>
    %c0_10 = arith.constant 0 : index
    %c0_11 = arith.constant 0 : index
    %13 = vector.load %arg6[%c0_10, %c0_11] : memref<8x1xf32, #tpu.memory_space<vmem>>, vector<8x1xf32>
    tpu.vector_store %arg6[%c0_10, %c0_11], %12 {strides = array<i32>} : memref<8x1xf32, #tpu.memory_space<vmem>>, vector<8x1xf32>,
    return
  }
  func.func @transform_0(%arg0: i32) -> (i32, i32) {
    %c0_i32 = arith.constant 0 : i32
    %c0_i32_0 = arith.constant 0 : i32
    return %arg0, %c0_i32 : i32, i32
  }
  func.func @transform_1(%arg0: i32) -> (i32, i32) {
    %c0_i32 = arith.constant 0 : i32
    %c0_i32_0 = arith.constant 0 : i32
    %c0_i32_1 = arith.constant 0 : i32
    return %c0_i32, %c0_i32_0 : i32, i32
  }
  func.func @transform_2(%arg0: i32) -> (i32, i32) {
    %c0_i32 = arith.constant 0 : i32
    %c0_i32_0 = arith.constant 0 : i32
    %c0_i32_1 = arith.constant 0 : i32
    return %c0_i32, %c0_i32_0 : i32, i32
  }
  func.func @transform_3(%arg0: i32) -> (i32, i32) {
    %c0_i32 = arith.constant 0 : i32
    %c0_i32_0 = arith.constant 0 : i32
    %c0_i32_1 = arith.constant 0 : i32
    return %c0_i32, %c0_i32_0 : i32, i32
  }
  func.func @transform_4(%arg0: i32) -> i32 {
    %c0_i32 = arith.constant 0 : i32
    %c0_i32_0 = arith.constant 0 : i32
    return %c0_i32 : i32
  }
  func.func @transform_5(%arg0: i32) -> (i32, i32) {
    %c0_i32 = arith.constant 0 : i32
    %c0_i32_0 = arith.constant 0 : i32
    return %arg0, %c0_i32 : i32, i32
  }
}

</mosaic_0001>

<llo_original>
// kernel: critic_forward.1
$region0: #{critic_forward.1}
  #allocation0 [shape = 'u32[]', space=smem, size = 0x4, offset = 0x4, fixed_abs, tag = 'smem constant byte address 0x4 - core index']
  #allocation1 [shape = 'u32[72,128]{1,0:T(1,128)}', space=vmem, size = 0x9000, scoped, tag = 'internal scratch']
  #allocation2 [shape = 'f32[1]{0:T(128)S(6)}', space=smem, size = 0x200, scoped, tag = 'scoped memory for critic_forward.1']
  %s0 = inlined_call_operand.vmem [shape: f32[8,5], index: 0, kind: input, shape index: {}]
  %s1 = inlined_call_operand.vmem [shape: f32[5,32], index: 1, kind: input, shape index: {}]
  %s2 = inlined_call_operand.vmem [shape: f32[1,32], index: 2, kind: input, shape index: {}]
  %s3 = inlined_call_operand.vmem [shape: f32[32,1], index: 3, kind: input, shape index: {}]
  %s4 = inlined_call_operand.<no memory space> [shape: f32[1], index: 4, kind: input, shape index: {}]
  %s5 = inlined_call_operand.vmem [shape: f32[8,1], index: 5, kind: output, shape index: {}]
  %s6 = sld [smem:[#allocation0]]
  $region30: #{critic_forward.1} parent=0
    _
  %s8 = ssub.s32 1, %s6
  %s9 = scalar_select 0, %s8, %s6
  %10 = sst [smem:[#allocation2]] %s4
  // Predicated region
  $region2: #{critic_forward.1} parent=0 // pred_check
    _
  $region3: #{critic_forward.1} parent=0 // pred_check_branch
    %12 = sbr.rel (0) target = $region5
  $region4: #{critic_forward.1} parent=0 // pred_region
    _
  $region5: #{critic_forward.1} parent=0 // pred_fallthru
    _
  // Predicated region
  $region6: #{critic_forward.1} parent=0 // pred_check
    _
  $region7: #{critic_forward.1} parent=0 // pred_check_branch
    %14 = sbr.rel (0) target = $region9
  $region8: #{critic_forward.1} parent=0 // pred_region
    _
  $region9: #{critic_forward.1} parent=0 // pred_fallthru
    _
  // Predicated region
  $region10: #{critic_forward.1} parent=0 // pred_check
    _
  $region11: #{critic_forward.1} parent=0 // pred_check_branch
    %16 = sbr.rel (0) target = $region13
  $region12: #{critic_forward.1} parent=0 // pred_region
    _
  $region13: #{critic_forward.1} parent=0 // pred_fallthru
    _
  // Predicated region
  $region14: #{critic_forward.1} parent=0 // pred_check
    _
  $region15: #{critic_forward.1} parent=0 // pred_check_branch
    %18 = sbr.rel (0) target = $region17
  $region16: #{critic_forward.1} parent=0 // pred_region
    _
  $region17: #{critic_forward.1} parent=0 // pred_fallthru
    _
  // Predicated region
  $region18: #{critic_forward.1} parent=0 // pred_check
    _
  $region19: #{critic_forward.1} parent=0 // pred_check_branch
    %20 = sbr.rel (0) target = $region21
  $region20: #{critic_forward.1} parent=0 // pred_region
    _
  $region21: #{critic_forward.1} parent=0 // pred_fallthru
    _
  %v21 = vld [vmem:[%s0] sm:$0xff]
  %v22 = vld [vmem:[%s1] sm:$0x1f]
  %v23 = vld [vmem:[%s2] sm:$0x1]
  %v25 = vperm.slane %v23, 0
  %vm27 = vcmask 39936
  %v29 = vsel %vm27, %v21, 0
  %vm31 = vcmask 1044480
  %v33 = vsel %vm31, %v22, 0
  %35 = vmatpush.msra.mxu0 0.0
  %36 = vmatpush.msra.mxu0 0.0
  %37 = vmatpush.msra.mxu0 0.0
  %38 = vmatpush.msra.mxu0 0.0
  %39 = vmatpush.msra.mxu0 0.0
  %40 = vmatpush.msra.mxu0 0.0
  %41 = vmatpush.msra.mxu0 0.0
  %42 = vmatpush.msra.mxu0 0.0
  %43 = vmatpush.msra.mxu0 0.0
  %44 = vmatpush.msra.mxu0 0.0
  %45 = vmatpush.msra.mxu0 0.0
  %46 = vmatpush.msra.mxu0 0.0
  %47 = vmatpush.msra.mxu0 0.0
  %48 = vmatpush.msra.mxu0 0.0
  %49 = vmatpush.msra.mxu0 0.0
  %50 = vmatpush.msra.mxu0 %v33
  %51 = vmatmul.f32.gmra.mxu0 %v29
  %v52 = vpop.f32.mrf.mxu0
  %v53 = vadd.f32 %v25, %v52
  %54 = vdwg.mxu0
  %v55 = vmax.f32 %v53, 0.0
  %v56 = vld [vmem:[%s3] sm:$0xff]
  %v57 = vld [vmem:[%s3 + $0x8] sm:$0xff]
  %v58 = vld [vmem:[%s3 + $0x10] sm:$0xff]
  %v59 = vld [vmem:[%s3 + $0x18] sm:$0xff]
  %s60 = sld [smem:[#allocation2]]
  %v61 = vstv %s60
  %vm62 = vcmask 261120
  %v64 = vsel %vm62, %v55, 0
  %66 = vmatpush.msra.mxu0 0.0
  %67 = vmatpush.msra.mxu0 0.0
  %68 = vmatpush.msra.mxu0 0.0
  %69 = vmatpush.msra.mxu0 0.0
  %70 = vmatpush.msra.mxu0 0.0
  %71 = vmatpush.msra.mxu0 0.0
  %72 = vmatpush.msra.mxu0 0.0
  %73 = vmatpush.msra.mxu0 0.0
  %74 = vmatpush.msra.mxu0 0.0
  %75 = vmatpush.msra.mxu0 0.0
  %76 = vmatpush.msra.mxu0 0.0
  %77 = vmatpush.msra.mxu0 0.0
  %78 = vmatpush.msra.mxu0 %v59
  %79 = vmatpush.msra.mxu0 %v58
  %80 = vmatpush.msra.mxu0 %v57
  %81 = vmatpush.msra.mxu0 %v56
  %82 = vmatmul.f32.gmra.mxu0 %v64
  %v83 = vpop.f32.mrf.mxu0
  %v84 = vadd.f32 %v61, %v83
  %85 = vdwg.mxu0
  %vm86 = vcmask 7168
  %87 = vst.msk [vmem:[%s5] sm:$0xff] %vm86, %v84
  // Predicated region
  $region22: #{critic_forward.1} parent=0 // pred_check
    _
  $region23: #{critic_forward.1} parent=0 // pred_check_branch
    %89 = sbr.rel (0) target = $region25
  $region24: #{critic_forward.1} parent=0 // pred_region
    _
  $region25: #{critic_forward.1} parent=0 // pred_fallthru
    _
  // Predicated region
  $region26: #{critic_forward.1} parent=0 // pred_check
    _
  $region27: #{critic_forward.1} parent=0 // pred_check_branch
    %91 = sbr.rel (0) target = $region29
  $region28: #{critic_forward.1} parent=0 // pred_region
    _
  $region29: #{critic_forward.1} parent=0 // pred_fallthru
    _

</llo_original>
